<compile_context>
chip_gen: v7x
topology: tpu7x:2x2x1
jax: 0.10.0
libtpu: 0.0.40
codegen_flags: <defaults>
</compile_context>

<pallas_src>
import math

import jax
import jax.numpy as jnp
from jax.experimental import pallas as pl
from jax.experimental.pallas import tpu as pltpu


def build_pe_table(max_len: int, n_filters: int) -> jnp.ndarray:
    """Deterministic sinusoidal PE table, identical math to the PyTorch __init__."""
    assert n_filters % 2 == 0, "n_filters must be even (sin/cos interleave)"
    position = jnp.arange(max_len, dtype=jnp.float32)[:, None]              # (max_len, 1)
    div_term = jnp.exp(
        jnp.arange(0, n_filters, 2, dtype=jnp.float32)
        * -(math.log(10000.0) / n_filters)
    )                                                                        # (n_filters//2,)
    sin_part = jnp.sin(position * div_term)                                  # (max_len, D//2)
    cos_part = jnp.cos(position * div_term)                                  # (max_len, D//2)
    # interleave: even cols <- sin, odd cols <- cos
    pe = jnp.stack([sin_part, cos_part], axis=-1).reshape(max_len, n_filters)
    return pe.astype(jnp.float32)


def pack_pe_table(pe: jnp.ndarray, group: int) -> jnp.ndarray:
    """Block-diagonal expansion: pe_packed[g*max_len + m, g*D + d] = pe[m, d].

    Pure layout plumbing -- callers reusing the same table should build and
    cache this once per (pe, D) rather than per forward call.
    """
    pe = pe.astype(jnp.float32)
    if group == 1:
        return pe
    return jnp.kron(jnp.eye(group, dtype=jnp.float32), pe)


def pos_encoding_kernel(t_ref, x_ref, pe_ref, o_ref, acc_ref):
    """Grid = (row_tiles [parallel], table_chunks [arbitrary]).

    t_ref  : VMEM (tile, G)        int32 packed-table row ids (group offsets folded in)
    x_ref  : VMEM (tile, lane_w)   input rows, lane-dense
    pe_ref : VMEM (chunk, lane_w)  f32 K-chunk of the (block-diagonal) PE table
    o_ref  : VMEM (tile, lane_w)   output rows
    acc_ref: VMEM (tile, lane_w)   f32 accumulator scratch (persists across k)
    """
    k = pl.program_id(1)

    @pl.when(k == 0)
    def _init():
        acc_ref[...] = x_ref[...].astype(jnp.float32)

    _, num_groups = t_ref.shape
    chunk = pe_ref.shape[0]
    base = k * chunk

    cid = t_ref[...]                                                    # (rows, G)
    col = jax.lax.broadcasted_iota(jnp.int32, (1, chunk), 1) + base     # (1, chunk)

    # One-hot selection mask: OR of boolean compares (per-group column ranges
    # in the packed table are disjoint), single cast.
    mask = col == cid[:, 0:1]                                           # (rows, chunk)
    for g in range(1, num_groups):                                      # G is small & static
        mask = mask | (col == cid[:, g:g + 1])
    one_hot = mask.astype(jnp.float32)

    # Gather this table chunk's rows for the whole tile on the MXU.
    # TODO(synk): on v5e with max_len in the thousands, a per-8-row
    # dynamic-slice gather would avoid flipping the kernel MXU-bound.
    acc_ref[...] += jnp.dot(one_hot, pe_ref[...],
                            preferred_element_type=jnp.float32)

    @pl.when(k == pl.num_programs(1) - 1)
    def _finalize():
        o_ref[...] = acc_ref[...].astype(o_ref.dtype)


def _pick_row_tile(n_rows: int, row_bytes: int, target_bytes: int,
                   chunk_rows: int, onehot_budget_bytes: int,
                   min_tiles: int = 2) -> int:
    """Largest row tile that divides n_rows, is a multiple of 8 (or the full
    extent), fits the x/out byte target AND the one-hot (tile x chunk) budget,
    and -- when possible -- leaves at least `min_tiles` grid steps so both
    v7x TensorCores get work on the 'parallel' axis."""
    if n_rows <= 8:
        return n_rows
    cap = min(target_bytes // max(row_bytes, 1),
              onehot_budget_bytes // max(4 * chunk_rows, 1))
    cap = max(8, (cap // 8) * 8)
    cap = min(cap, n_rows)
    if n_rows >= min_tiles * 8:
        cap = min(cap, max(8, ((n_rows // min_tiles) // 8) * 8))
    t = cap
    while t >= 8:
        if n_rows % t == 0:
            return t
        t -= 8
    return n_rows   # no multiple-of-8 divisor: single full-extent tile


def position_encoding(x: jnp.ndarray, times: jnp.ndarray, pe: jnp.ndarray,
                      *, target_block_bytes: int = 2 << 20,
                      table_chunk_rows: int = 512,
                      onehot_budget_bytes: int = 2 << 20) -> jnp.ndarray:
    """x: (B, L, D), times: (B, L) int, pe: (max_len, D) f32 -> (B, L, D)."""
    B, L, D = x.shape
    max_len, d_pe = pe.shape
    assert d_pe == D
    n_rows = B * L

    # ---- lane-dense packing factor ------------------------------------------------
    if D % 128 == 0:
        G = 1                                   # already lane-dense
    elif D < 128 and 128 % D == 0:
        G = 128 // D                            # pack G sequence rows per 128-lane row
    else:
        G = 1                                   # TODO(synk): D not commensurate with
                                                # 128 lanes -> masked (vst.msk) stores.

    pad_rows = (-n_rows) % G                    # pad a few rows instead of masking all stores
    x_flat = x.reshape(n_rows, D)
    t_flat = jnp.clip(times.reshape(n_rows).astype(jnp.int32), 0, max_len - 1)
    if pad_rows:
        x_flat = jnp.pad(x_flat, ((0, pad_rows), (0, 0)))
        t_flat = jnp.pad(t_flat, ((0, pad_rows),))
    rows_flat = (n_rows + pad_rows) // G
    lane_w = G * D

    x_packed = x_flat.reshape(rows_flat, lane_w)
    # Fold each group's block offset into the ids (packed-table row space).
    t_packed = (t_flat.reshape(rows_flat, G)
                + (jnp.arange(G, dtype=jnp.int32) * max_len)[None, :])

    # Block-diagonal table (pure layout plumbing; cache per table in real use).
    pe_packed = pack_pe_table(pe, G)
    table_rows = pe_packed.shape[0]

    # ---- K-chunk the table-row axis (bounds one-hot size & PE VMEM footprint) -----
    if table_rows <= table_chunk_rows:
        chunk = table_rows                       # single chunk, full extent
        pe_tab = pe_packed
    else:
        chunk = table_chunk_rows                 # multiple of 8
        padded_rows = pl.cdiv(table_rows, chunk) * chunk
        pe_tab = jnp.pad(pe_packed, ((0, padded_rows - table_rows), (0, 0)))
    num_k = pe_tab.shape[0] // chunk

    # ---- row tiling ----------------------------------------------------------------
    row_bytes = lane_w * x.dtype.itemsize
    tile = _pick_row_tile(rows_flat, row_bytes, target_block_bytes,
                          chunk, onehot_budget_bytes)
    num_row_tiles = rows_flat // tile

    # ---- explicit VMEM budget (double-buffered blocks + scratch + temporaries) ----
    est = (2 * tile * lane_w * x.dtype.itemsize      # x blocks
           + 2 * tile * lane_w * x.dtype.itemsize    # out blocks
           + 2 * chunk * lane_w * 4                  # pe chunk blocks
           + 2 * tile * G * 4                        # time-id blocks
           + tile * lane_w * 4                       # f32 accumulator scratch
           + 2 * tile * chunk * 4)                   # one-hot / mask temporaries
    vmem_limit = int(min(64 << 20, max(est + (4 << 20), 16 << 20)))

    out_packed = pl.pallas_call(
        pos_encoding_kernel,
        out_shape=jax.ShapeDtypeStruct((rows_flat, lane_w), x.dtype),
        grid_spec=pltpu.PrefetchScalarGridSpec(
            num_scalar_prefetch=0,
            grid=(num_row_tiles, num_k),
            in_specs=[
                pl.BlockSpec((tile, G), lambda i, k: (i, 0)),          # packed time ids
                pl.BlockSpec((tile, lane_w), lambda i, k: (i, 0)),     # x rows
                pl.BlockSpec((chunk, lane_w), lambda i, k: (k, 0)),    # PE table K-chunk
            ],
            out_specs=pl.BlockSpec((tile, lane_w), lambda i, k: (i, 0)),
            scratch_shapes=[pltpu.VMEM((tile, lane_w), jnp.float32)],
        ),
        compiler_params=pltpu.CompilerParams(
            dimension_semantics=("parallel", "arbitrary"),
            vmem_limit_bytes=vmem_limit,
        ),
    )(t_packed, x_packed, pe_tab)

    out = out_packed.reshape(rows_flat * G, D)
    if pad_rows:
        out = out[:n_rows]
    return out.reshape(B, L, D)


if __name__ == "__main__":
    # Small shapes consistent with the module: n_filters (D) = 32, max_len = 64,
    # batch = 2, seq len L = 8.
    B, L, D, MAX_LEN = 2, 8, 32, 64

    key = jax.random.PRNGKey(0)
    kx, kt = jax.random.split(key)
    x = jax.random.normal(kx, (B, L, D), dtype=jnp.float32)
    times = jax.random.randint(kt, (B, L), 0, MAX_LEN, dtype=jnp.int32)

    pe = build_pe_table(MAX_LEN, D)

    out = position_encoding(x, times, pe)
    out = jax.block_until_ready(out)

    # Pure-JAX reference: x + pe[times]
    ref = x + pe[times]
    assert out.shape == x.shape and out.dtype == x.dtype
    assert jnp.allclose(out, ref, atol=1e-5, rtol=1e-5), "mismatch vs reference"

    print("KERNEL_OK")
</pallas_src>

<mosaic_0001>
module attributes {stable_mosaic.version = 11 : i64} {
  func.func @pos_encoding_kernel(%arg0: i32, %arg1: i32, %arg2: memref<4x4xi32, #tpu.memory_space<vmem>>, %arg3: memref<4x128xf32, #tpu.memory_space<vmem>>, %arg4: memref<256x128xf32, #tpu.memory_space<vmem>>, %arg5: memref<4x128xf32, #tpu.memory_space<vmem>>, %arg6: memref<4x128xf32, #tpu.memory_space<vmem>>) attributes {dimension_semantics = [#tpu.dimension_semantics<parallel>, #tpu.dimension_semantics<arbitrary>], iteration_bounds = array<i64: 1, 1>, scalar_prefetch = 0 : i64, scratch_operands = 1 : i64, tpu.core_type = #tpu.core_type<tc>, window_params = [{transform_indices = @transform_0, window_bounds = array<i64: 4, 4>}, {transform_indices = @transform_1, window_bounds = array<i64: 4, 128>}, {transform_indices = @transform_2, window_bounds = array<i64: 256, 128>}, {transform_indices = @transform_3, window_bounds = array<i64: 4, 128>}]} {
    %c0_i32 = arith.constant 0 : i32
    %0 = arith.cmpi eq, %arg1, %c0_i32 : i32
    %1 = arith.extui %0 : i1 to i32
    %c0_i32_0 = arith.constant 0 : i32
    %2 = arith.cmpi ne, %1, %c0_i32_0 : i32
    scf.if %2 {
      %c0_10 = arith.constant 0 : index
      %c0_11 = arith.constant 0 : index
      %37 = vector.load %arg3[%c0_10, %c0_11] : memref<4x128xf32, #tpu.memory_space<vmem>>, vector<4x128xf32>
      %c0_12 = arith.constant 0 : index
      %c0_13 = arith.constant 0 : index
      %38 = vector.load %arg6[%c0_12, %c0_13] : memref<4x128xf32, #tpu.memory_space<vmem>>, vector<4x128xf32>
      tpu.vector_store %arg6[%c0_12, %c0_13], %37 {strides = array<i32>} : memref<4x128xf32, #tpu.memory_space<vmem>>, vector<4x128xf32>,
    } else {
    }
    %c256_i32 = arith.constant 256 : i32
    %3 = arith.muli %arg1, %c256_i32 : i32
    %c0 = arith.constant 0 : index
    %c0_1 = arith.constant 0 : index
    %4 = vector.load %arg2[%c0, %c0_1] : memref<4x4xi32, #tpu.memory_space<vmem>>, vector<4x4xi32>
    %5 = tpu.iota {dimensions = array<i32: 1>} : vector<1x256xi32>
    %6 = vector.broadcast %3 : i32 to vector<1x256xi32>
    %7 = arith.addi %5, %6 : vector<1x256xi32>
    %8 = vector.extract_strided_slice %4 {offsets = [0, 0], sizes = [4, 1], strides = [1, 1]} : vector<4x4xi32> to vector<4x1xi32>
    %9 = vector.broadcast %7 : vector<1x256xi32> to vector<4x256xi32>
    %10 = vector.broadcast %8 : vector<4x1xi32> to vector<4x256xi32>
    %11 = arith.cmpi eq, %9, %10 : vector<4x256xi32>
    %12 = vector.extract_strided_slice %4 {offsets = [0, 1], sizes = [4, 1], strides = [1, 1]} : vector<4x4xi32> to vector<4x1xi32>
    %13 = vector.broadcast %7 : vector<1x256xi32> to vector<4x256xi32>
    %14 = vector.broadcast %12 : vector<4x1xi32> to vector<4x256xi32>
    %15 = arith.cmpi eq, %13, %14 : vector<4x256xi32>
    %16 = arith.ori %11, %15 : vector<4x256xi1>
    %17 = vector.extract_strided_slice %4 {offsets = [0, 2], sizes = [4, 1], strides = [1, 1]} : vector<4x4xi32> to vector<4x1xi32>
    %18 = vector.broadcast %7 : vector<1x256xi32> to vector<4x256xi32>
    %19 = vector.broadcast %17 : vector<4x1xi32> to vector<4x256xi32>
    %20 = arith.cmpi eq, %18, %19 : vector<4x256xi32>
    %21 = arith.ori %16, %20 : vector<4x256xi1>
    %22 = vector.extract_strided_slice %4 {offsets = [0, 3], sizes = [4, 1], strides = [1, 1]} : vector<4x4xi32> to vector<4x1xi32>
    %23 = vector.broadcast %7 : vector<1x256xi32> to vector<4x256xi32>
    %24 = vector.broadcast %22 : vector<4x1xi32> to vector<4x256xi32>
    %25 = arith.cmpi eq, %23, %24 : vector<4x256xi32>
    %26 = arith.ori %21, %25 : vector<4x256xi1>
    %27 = arith.extui %26 : vector<4x256xi1> to vector<4x256xi32>
    %28 = arith.sitofp %27 : vector<4x256xi32> to vector<4x256xf32>
    %c0_2 = arith.constant 0 : index
    %c0_3 = arith.constant 0 : index
    %29 = vector.load %arg6[%c0_2, %c0_3] : memref<4x128xf32, #tpu.memory_space<vmem>>, vector<4x128xf32>
    %c0_4 = arith.constant 0 : index
    %c0_5 = arith.constant 0 : index
    %30 = vector.load %arg4[%c0_4, %c0_5] : memref<256x128xf32, #tpu.memory_space<vmem>>, vector<256x128xf32>
    %cst = arith.constant dense<0.000000e+00> : vector<4x128xf32>
    %31 = tpu.matmul %28, %30, %cst {dimension_numbers = #tpu.dot_dimension_numbers<[1], [0], [0], [1], [0, 0, 1, 1], [], []>} : vector<4x256xf32>, vector<256x128xf32>, vector<4x128xf32> -> vector<4x128xf32>
    %32 = arith.addf %29, %31 : vector<4x128xf32>
    %c0_6 = arith.constant 0 : index
    %c0_7 = arith.constant 0 : index
    %33 = vector.load %arg6[%c0_6, %c0_7] : memref<4x128xf32, #tpu.memory_space<vmem>>, vector<4x128xf32>
    tpu.vector_store %arg6[%c0_6, %c0_7], %32 {strides = array<i32>} : memref<4x128xf32, #tpu.memory_space<vmem>>, vector<4x128xf32>,
    %c0_i32_8 = arith.constant 0 : i32
    %34 = arith.cmpi eq, %arg1, %c0_i32_8 : i32
    %35 = arith.extui %34 : i1 to i32
    %c0_i32_9 = arith.constant 0 : i32
    %36 = arith.cmpi ne, %35, %c0_i32_9 : i32
    scf.if %36 {
      %c0_10 = arith.constant 0 : index
      %c0_11 = arith.constant 0 : index
      %37 = vector.load %arg6[%c0_10, %c0_11] : memref<4x128xf32, #tpu.memory_space<vmem>>, vector<4x128xf32>
      %c0_12 = arith.constant 0 : index
      %c0_13 = arith.constant 0 : index
      %38 = vector.load %arg5[%c0_12, %c0_13] : memref<4x128xf32, #tpu.memory_space<vmem>>, vector<4x128xf32>
      tpu.vector_store %arg5[%c0_12, %c0_13], %37 {strides = array<i32>} : memref<4x128xf32, #tpu.memory_space<vmem>>, vector<4x128xf32>,
    } else {
    }
    return
  }
  func.func @transform_0(%arg0: i32, %arg1: i32) -> (i32, i32) {
    %c0_i32 = arith.constant 0 : i32
    %c0_i32_0 = arith.constant 0 : i32
    return %arg0, %c0_i32 : i32, i32
  }
  func.func @transform_1(%arg0: i32, %arg1: i32) -> (i32, i32) {
    %c0_i32 = arith.constant 0 : i32
    %c0_i32_0 = arith.constant 0 : i32
    return %arg0, %c0_i32 : i32, i32
  }
  func.func @transform_2(%arg0: i32, %arg1: i32) -> (i32, i32) {
    %c0_i32 = arith.constant 0 : i32
    %c0_i32_0 = arith.constant 0 : i32
    return %arg1, %c0_i32 : i32, i32
  }
  func.func @transform_3(%arg0: i32, %arg1: i32) -> (i32, i32) {
    %c0_i32 = arith.constant 0 : i32
    %c0_i32_0 = arith.constant 0 : i32
    return %arg0, %c0_i32 : i32, i32
  }
}

</mosaic_0001>

<llo_original>
// kernel: tpu_custom_call.1
$region0: #{tpu_custom_call.1}
  #allocation0 [shape = 'u32[]', space=smem, size = 0x4, offset = 0x4, fixed_abs, tag = 'smem constant byte address 0x4 - core index']
  #allocation1 [shape = 'u32[144,128]{1,0:T(1,128)}', space=vmem, size = 0x12000, scoped, tag = 'internal scratch']
  #allocation2 [shape = 'f32[4,128]{1,0:T(4,128)}', space=vmem, size = 0x800, scoped, tag = 'scratch operand']
  %s0 = inlined_call_operand.hbm [shape: s32[4,4], index: 0, kind: input, shape index: {}]
  %s1 = inlined_call_operand.hbm [shape: f32[4,128], index: 1, kind: input, shape index: {}]
  %s2 = inlined_call_operand.hbm [shape: f32[256,128], index: 2, kind: input, shape index: {}]
  %s3 = inlined_call_operand.hbm [shape: f32[4,128], index: 3, kind: output, shape index: {}]
  %s4 = sld [smem:[#allocation0]]
  $region42: #{tpu_custom_call.1} parent=0
    _
  %s6 = ssub.s32 1, %s4
  %s7 = scalar_select 0, %s6, %s4
  $region1: #{tpu_custom_call.1} parent=0
    #allocation3 [shape = 'u8[2048]{0}', space=vmem, size = 0x800, scoped, tag = 'input window, operand 0, single buffered']
    #allocation4 [shape = 's32[1]{0}', space=sflag, size = 0x4, scoped, tag = 'scoped memory for tpu_custom_call.1']
    #allocation5 [shape = 's32[1]{0}', space=sflag, size = 0x4, scoped, tag = 'scoped memory for tpu_custom_call.1']
    #allocation6 [shape = 'u8[2048]{0}', space=vmem, size = 0x800, scoped, tag = 'input window, operand 1, single buffered']
    #allocation7 [shape = 's32[1]{0}', space=sflag, size = 0x4, scoped, tag = 'scoped memory for tpu_custom_call.1']
    #allocation8 [shape = 'u8[131072]{0}', space=vmem, size = 0x20000, scoped, tag = 'input window, operand 2, single buffered']
    #allocation9 [shape = 'u8[2048]{0}', space=vmem, size = 0x800, scoped, tag = 'output window, operand 0, single buffered']
    %8 = vsyncpa [#allocation4], 0
    %9 = vsyncpa [#allocation7], 0
    %10 = vsyncpa [#allocation5], 0
    // Predicated region
    $region2: #{tpu_custom_call.1} parent=1 // pred_check
      _
    $region3: #{tpu_custom_call.1} parent=1 // pred_check_branch
      %12 = sbr.rel (0) target = $region5
    $region4: #{tpu_custom_call.1} parent=1 // pred_region
      %s14 = ssub.s32 64, 64
      %15 = vsyncadd [#allocation4], %s14
      %s17 = sshll.u32 [#allocation3], 4
      %s18 = int_to_ptr.vmem [resolvable:$true] %s17
      %20 = dma.hbm_to_vmem [thread:$0]  %s0, 64, %s18, [#allocation4]
    $region5: #{tpu_custom_call.1} parent=1 // pred_fallthru
      _
    // Predicated region
    $region6: #{tpu_custom_call.1} parent=1 // pred_check
      _
    $region7: #{tpu_custom_call.1} parent=1 // pred_check_branch
      %22 = sbr.rel (0) target = $region9
    $region8: #{tpu_custom_call.1} parent=1 // pred_region
      %s24 = ssub.s32 64, 64
      %25 = vsyncadd [#allocation7], %s24
      %s27 = sshll.u32 [#allocation6], 4
      %s28 = int_to_ptr.vmem [resolvable:$true] %s27
      %30 = dma.hbm_to_vmem [thread:$0]  %s1, 64, %s28, [#allocation7]
    $region9: #{tpu_custom_call.1} parent=1 // pred_fallthru
      _
    // Predicated region
    $region10: #{tpu_custom_call.1} parent=1 // pred_check
      _
    $region11: #{tpu_custom_call.1} parent=1 // pred_check_branch
      %32 = sbr.rel (0) target = $region13
    $region12: #{tpu_custom_call.1} parent=1 // pred_region
      %s34 = ssub.s32 4096, 4096
      %35 = vsyncadd [#allocation7], %s34
      %s36 = sshll.u32 [#allocation8], 4
      %s37 = int_to_ptr.vmem [resolvable:$true] %s36
      %42 = dma.hbm_to_vmem [thread:$0]  %s2, 4096, %s37, [#allocation7], 128, 128, 8
    $region13: #{tpu_custom_call.1} parent=1 // pred_fallthru
      _
    // Predicated region
    $region14: #{tpu_custom_call.1} parent=1 // pred_check
      _
    $region15: #{tpu_custom_call.1} parent=1 // pred_check_branch
      %44 = sbr.rel (0) target = $region17
    $region16: #{tpu_custom_call.1} parent=1 // pred_region
      %45 = dma.done [#allocation4], 64
    $region17: #{tpu_custom_call.1} parent=1 // pred_fallthru
      _
    // Predicated region
    $region18: #{tpu_custom_call.1} parent=1 // pred_check
      _
    $region19: #{tpu_custom_call.1} parent=1 // pred_check_branch
      %47 = sbr.rel (0) target = $region21
    $region20: #{tpu_custom_call.1} parent=1 // pred_region
      %48 = dma.done [#allocation7], 64
    $region21: #{tpu_custom_call.1} parent=1 // pred_fallthru
      _
    // Predicated region
    $region22: #{tpu_custom_call.1} parent=1 // pred_check
      _
    $region23: #{tpu_custom_call.1} parent=1 // pred_check_branch
      %50 = sbr.rel (0) target = $region25
    $region24: #{tpu_custom_call.1} parent=1 // pred_region
      %51 = dma.done [#allocation7], 4096
    $region25: #{tpu_custom_call.1} parent=1 // pred_fallthru
      _
    %p52 = scmp.eq.s32.totalorder 0, 0
    // Predicated region
    $region26: #{tpu_custom_call.1} parent=1 // pred_check
      %p53 = pneg %p52
    $region27: #{tpu_custom_call.1} parent=1 // pred_check_branch
      %55 = sbr.rel (%p53) target = $region29
    $region28: #{tpu_custom_call.1} parent=1 // pred_region
      %v56 = vld [vmem:[#allocation6] sm:$0xf]
      %57 = vst [vmem:[#allocation2] sm:$0xf] %v56
    $region29: #{tpu_custom_call.1} parent=1 // pred_fallthru
      _
    %s58 = smul.u32 0, 256
    %v59 = vld [vmem:[#allocation3] sm:$0xf]
    %v60 = vlaneseq
    %v61 = vand.u32 %v60, 127
    %v62 = vadd.s32 %v61, 128
    %v63 = vstv %s58
    %v64 = vadd.s32 %v61, %v63
    %v65 = vadd.s32 %v62, %v63
    %66 = vset.pattern.permute.xlu0 0
    %67 = vperm.xlu0 %66, %v59
    %v68 = vpop.permute.xlu0 %67
    %vm69 = vcmp.eq.s32.totalorder %v64, %v68
    %vm70 = vcmp.eq.s32.totalorder %v65, %v68
    %71 = vset.pattern.permute.xlu0 1
    %72 = vperm.xlu0 %71, %v59
    %v73 = vpop.permute.xlu0 %72
    %vm74 = vcmp.eq.s32.totalorder %v64, %v73
    %vm75 = vcmp.eq.s32.totalorder %v65, %v73
    %vm76 = vmor %vm69, %vm74
    %vm77 = vmor %vm70, %vm75
    %78 = vset.pattern.permute.xlu0 2
    %79 = vperm.xlu0 %78, %v59
    %v80 = vpop.permute.xlu0 %79
    %vm81 = vcmp.eq.s32.totalorder %v64, %v80
    %vm82 = vcmp.eq.s32.totalorder %v65, %v80
    %vm83 = vmor %vm76, %vm81
    %vm84 = vmor %vm77, %vm82
    %85 = vset.pattern.permute.xlu0 3
    %86 = vperm.xlu0 %85, %v59
    %v87 = vpop.permute.xlu0 %86
    %vm88 = vcmp.eq.s32.totalorder %v64, %v87
    %vm89 = vcmp.eq.s32.totalorder %v65, %v87
    %vm90 = vmor %vm83, %vm88
    %vm91 = vmor %vm84, %vm89
    %v92 = vsel %vm90, 1, 0
    %v93 = vsel %vm91, 1, 0
    %v94 = vcvt.s32.f32 %v92
    %v95 = vcvt.s32.f32 %v93
    %v96 = vld [vmem:[#allocation2] sm:$0xf]
    %v97 = vld [vmem:[#allocation8] sm:$0xff]
    %v98 = vld [vmem:[#allocation8 + $0x8] sm:$0xff]
    %v99 = vld [vmem:[#allocation8 + $0x10] sm:$0xff]
    %v100 = vld [vmem:[#allocation8 + $0x18] sm:$0xff]
    %v101 = vld [vmem:[#allocation8 + $0x20] sm:$0xff]
    %v102 = vld [vmem:[#allocation8 + $0x28] sm:$0xff]
    %v103 = vld [vmem:[#allocation8 + $0x30] sm:$0xff]
    %v104 = vld [vmem:[#allocation8 + $0x38] sm:$0xff]
    %v105 = vld [vmem:[#allocation8 + $0x40] sm:$0xff]
    %v106 = vld [vmem:[#allocation8 + $0x48] sm:$0xff]
    %v107 = vld [vmem:[#allocation8 + $0x50] sm:$0xff]
    %v108 = vld [vmem:[#allocation8 + $0x58] sm:$0xff]
    %v109 = vld [vmem:[#allocation8 + $0x60] sm:$0xff]
    %v110 = vld [vmem:[#allocation8 + $0x68] sm:$0xff]
    %v111 = vld [vmem:[#allocation8 + $0x70] sm:$0xff]
    %v112 = vld [vmem:[#allocation8 + $0x78] sm:$0xff]
    %v113 = vld [vmem:[#allocation8 + $0x80] sm:$0xff]
    %v114 = vld [vmem:[#allocation8 + $0x88] sm:$0xff]
    %v115 = vld [vmem:[#allocation8 + $0x90] sm:$0xff]
    %v116 = vld [vmem:[#allocation8 + $0x98] sm:$0xff]
    %v117 = vld [vmem:[#allocation8 + $0xa0] sm:$0xff]
    %v118 = vld [vmem:[#allocation8 + $0xa8] sm:$0xff]
    %v119 = vld [vmem:[#allocation8 + $0xb0] sm:$0xff]
    %v120 = vld [vmem:[#allocation8 + $0xb8] sm:$0xff]
    %v121 = vld [vmem:[#allocation8 + $0xc0] sm:$0xff]
    %v122 = vld [vmem:[#allocation8 + $0xc8] sm:$0xff]
    %v123 = vld [vmem:[#allocation8 + $0xd0] sm:$0xff]
    %v124 = vld [vmem:[#allocation8 + $0xd8] sm:$0xff]
    %v125 = vld [vmem:[#allocation8 + $0xe0] sm:$0xff]
    %v126 = vld [vmem:[#allocation8 + $0xe8] sm:$0xff]
    %v127 = vld [vmem:[#allocation8 + $0xf0] sm:$0xff]
    %v128 = vld [vmem:[#allocation8 + $0xf8] sm:$0xff]
    %129 = vmatprep.subr.mxu0 0.0
    %130 = vmatpush1.msra.mxu0 %v97
    %131 = vmatprep.subr.mxu0 0.0
    %132 = vmatpush1.msra.mxu0 %v98
    %133 = vmatprep.subr.mxu0 0.0
    %134 = vmatpush1.msra.mxu0 %v99
    %135 = vmatprep.subr.mxu0 0.0
    %136 = vmatpush1.msra.mxu0 %v100
    %137 = vmatprep.subr.mxu0 0.0
    %138 = vmatpush1.msra.mxu0 %v101
    %139 = vmatprep.subr.mxu0 0.0
    %140 = vmatpush1.msra.mxu0 %v102
    %141 = vmatprep.subr.mxu0 0.0
    %142 = vmatpush1.msra.mxu0 %v103
    %143 = vmatprep.subr.mxu0 0.0
    %144 = vmatpush1.msra.mxu0 %v104
    %145 = vmatprep.subr.mxu0 0.0
    %146 = vmatpush1.msra.mxu0 %v105
    %147 = vmatprep.subr.mxu0 0.0
    %148 = vmatpush1.msra.mxu0 %v106
    %149 = vmatprep.subr.mxu0 0.0
    %150 = vmatpush1.msra.mxu0 %v107
    %151 = vmatprep.subr.mxu0 0.0
    %152 = vmatpush1.msra.mxu0 %v108
    %153 = vmatprep.subr.mxu0 0.0
    %154 = vmatpush1.msra.mxu0 %v109
    %155 = vmatprep.subr.mxu0 0.0
    %156 = vmatpush1.msra.mxu0 %v110
    %157 = vmatprep.subr.mxu0 0.0
    %158 = vmatpush1.msra.mxu0 %v111
    %159 = vmatprep.subr.mxu0 0.0
    %160 = vmatpush1.msra.mxu0 %v112
    %161 = vmatprep.subr.mxu0 0.0
    %162 = vmatpush1.msra.mxu0 %v113
    %163 = vmatprep.subr.mxu0 0.0
    %164 = vmatpush1.msra.mxu0 %v114
    %165 = vmatprep.subr.mxu0 0.0
    %166 = vmatpush1.msra.mxu0 %v115
    %167 = vmatprep.subr.mxu0 0.0
    %168 = vmatpush1.msra.mxu0 %v116
    %169 = vmatprep.subr.mxu0 0.0
    %170 = vmatpush1.msra.mxu0 %v117
    %171 = vmatprep.subr.mxu0 0.0
    %172 = vmatpush1.msra.mxu0 %v118
    %173 = vmatprep.subr.mxu0 0.0
    %174 = vmatpush1.msra.mxu0 %v119
    %175 = vmatprep.subr.mxu0 0.0
    %176 = vmatpush1.msra.mxu0 %v120
    %177 = vmatprep.subr.mxu0 0.0
    %178 = vmatpush1.msra.mxu0 %v121
    %179 = vmatprep.subr.mxu0 0.0
    %180 = vmatpush1.msra.mxu0 %v122
    %181 = vmatprep.subr.mxu0 0.0
    %182 = vmatpush1.msra.mxu0 %v123
    %183 = vmatprep.subr.mxu0 0.0
    %184 = vmatpush1.msra.mxu0 %v124
    %185 = vmatprep.subr.mxu0 0.0
    %186 = vmatpush1.msra.mxu0 %v125
    %187 = vmatprep.subr.mxu0 0.0
    %188 = vmatpush1.msra.mxu0 %v126
    %189 = vmatprep.subr.mxu0 0.0
    %190 = vmatpush1.msra.mxu0 %v127
    %191 = vmatprep.subr.mxu0 0.0
    %192 = vmatpush1.msra.mxu0 %v128
    %193 = vmatprep.mubr.f32.mxu0 %v95
    %194 = vmatmul.mubr.f32.gmra.mrb[0].mxu0 %v94
    %v195 = vpop.f32.mrb[0].mxu0
    %v196 = vadd.f32 0.0, %v195
    %v197 = vpop.f32.mrb[0].mxu0
    %198 = vdwg.mxu0
    %v199 = vadd.f32 %v96, %v196
    %200 = vst [vmem:[#allocation2] sm:$0xf] %v199
    // Predicated region
    $region30: #{tpu_custom_call.1} parent=1 // pred_check
      %p201 = pneg %p52
    $region31: #{tpu_custom_call.1} parent=1 // pred_check_branch
      %203 = sbr.rel (%p201) target = $region33
    $region32: #{tpu_custom_call.1} parent=1 // pred_region
      %v204 = vld [vmem:[#allocation2] sm:$0xf]
      %205 = vst [vmem:[#allocation9] sm:$0xf] %v204
    $region33: #{tpu_custom_call.1} parent=1 // pred_fallthru
      _
    // Predicated region
    $region34: #{tpu_custom_call.1} parent=1 // pred_check
      _
    $region35: #{tpu_custom_call.1} parent=1 // pred_check_branch
      %207 = sbr.rel (0) target = $region37
    $region36: #{tpu_custom_call.1} parent=1 // pred_region
      %s209 = ssub.s32 64, 64
      %210 = vsyncadd [#allocation5], %s209
      %s212 = sshll.u32 [#allocation9], 4
      %s213 = int_to_ptr.vmem [resolvable:$true] %s212
      %215 = dma.vmem_to_hbm [thread:$0]  %s213, 64, %s3, [#allocation5]
    $region37: #{tpu_custom_call.1} parent=1 // pred_fallthru
      _
    // Predicated region
    $region38: #{tpu_custom_call.1} parent=1 // pred_check
      _
    $region39: #{tpu_custom_call.1} parent=1 // pred_check_branch
      %217 = sbr.rel (0) target = $region41
    $region40: #{tpu_custom_call.1} parent=1 // pred_region
      %218 = dma.done [#allocation5], 64
    $region41: #{tpu_custom_call.1} parent=1 // pred_fallthru
      _
    %219 = vsyncpa [#allocation4], 1
    %220 = vsyncpa [#allocation7], 1
    %221 = vsyncpa [#allocation5], 1

</llo_original>
